<compile_context>
chip_gen: v7x
topology: tpu7x:2x2x1
jax: 0.10.0
libtpu: 0.0.40
codegen_flags: <defaults>
</compile_context>

<pallas_src>
import math

import jax
import jax.numpy as jnp
from jax import lax
from jax.experimental import pallas as pl
from jax.experimental.pallas import tpu as pltpu

LN_EPS = 1e-5
MASK_FILL = -1000000000.0  # matches torch masked_fill value


def _layernorm(h, gamma, beta):
    mu = jnp.mean(h, axis=-1, keepdims=True)
    var = jnp.mean(jnp.square(h - mu), axis=-1, keepdims=True)
    return (h - mu) * lax.rsqrt(var + LN_EPS) * gamma + beta


def _transformer_block_kernel(
    x_ref, mask_ref,
    wqkv_ref, wo_ref, w1_ref, w2_ref,
    vec_ref, b1_ref,
    out_ref, attn_ref,
):
    TB, S, D = x_ref.shape
    R = TB * S

    x = x_ref[...].reshape(R, D)        # (R, D) f32 — layout no-op collapse
    m = mask_ref[...]                   # (TB, 1, S) f32, broadcasts over queries
    vec = vec_ref[...]                  # (16, D) f32 packed LN / bias slab
    ln1_g, ln1_b = vec[0:1], vec[1:2]
    ln2_g, ln2_b = vec[2:3], vec[3:4]
    bq, bk, bv = vec[4:5], vec[5:6], vec[6:7]
    bo, b2 = vec[7:8], vec[8:9]
    b1 = b1_ref[...]                    # (1, F) f32

    # ---- LayerNorm 1 + fused QKV projection (one MXU matmul, all rows) ----
    xn = _layernorm(x, ln1_g, ln1_b)
    qkv = jnp.dot(xn.astype(jnp.bfloat16), wqkv_ref[...],
                  preferred_element_type=jnp.float32)          # (R, 3D) f32
    q = (qkv[:, 0 * D:1 * D] + bq).reshape(TB, S, D).astype(jnp.bfloat16)
    k = (qkv[:, 1 * D:2 * D] + bk).reshape(TB, S, D).astype(jnp.bfloat16)
    v = (qkv[:, 2 * D:3 * D] + bv).reshape(TB, S, D).astype(jnp.bfloat16)

    # ---- scaled, masked attention scores + softmax (f32 math) ----
    scores = jnp.einsum("bqd,bkd->bqk", q, k,
                        preferred_element_type=jnp.float32) * (1.0 / math.sqrt(D))
    scores = jnp.where(m == 0.0, MASK_FILL, scores)
    scores = scores - jnp.max(scores, axis=-1, keepdims=True)
    e = jnp.exp(scores)
    p = e * pl.reciprocal(jnp.sum(e, axis=-1, keepdims=True), approx=True)
    attn_ref[...] = p                   # (TB, S, S) normalized weights

    # ---- context + output projection (flattened rows) ----
    ctx = jnp.einsum("bqk,bkd->bqd", p.astype(jnp.bfloat16), v,
                     preferred_element_type=jnp.float32).reshape(R, D)
    attn_out = jnp.dot(ctx.astype(jnp.bfloat16), wo_ref[...],
                       preferred_element_type=jnp.float32) + bo

    # ---- residual 1 (dropout_1 is identity at inference) ----
    h = x + attn_out

    # ---- LayerNorm 2 + FeedForward (Linear -> Linear, no activation) ----
    hn = _layernorm(h, ln2_g, ln2_b)
    f = jnp.dot(hn.astype(jnp.bfloat16), w1_ref[...],
                preferred_element_type=jnp.float32) + b1
    f = jnp.dot(f.astype(jnp.bfloat16), w2_ref[...],
                preferred_element_type=jnp.float32) + b2

    # ---- residual 2 (dropout_2 is identity at inference) ----
    out_ref[...] = (h + f).reshape(TB, S, D)
    # TODO(synk): training-mode dropout (pltpu.prng_random_bits masks) omitted;
    # eval/inference semantics only.


def transformer_block_forward(x, mask, params, *, batch_block=None):
    """x: f32 [B, S, D]; mask: [B, S] (nonzero = keep); params: dict of weights.

    Returns (output [B, S, D], attention_weights [B, S, S]) like the torch module.
    """
    B, S, D = x.shape
    F = params["w1"].shape[1]
    TB = B if batch_block is None else batch_block
    assert B % TB == 0, "batch_block must divide batch size"

    mask3 = mask.reshape(B, 1, S).astype(jnp.float32)

    # Fused QKV weight + bf16 weights for the MXU (f32 accumulation in-kernel).
    wqkv = jnp.concatenate(
        [params["wq"], params["wk"], params["wv"]], axis=1).astype(jnp.bfloat16)
    wo = params["wo"].astype(jnp.bfloat16)
    w1 = params["w1"].astype(jnp.bfloat16)
    w2 = params["w2"].astype(jnp.bfloat16)

    # Pack the ten small per-channel vectors into one (16, D) f32 slab + (1, F).
    zero = jnp.zeros((D,), jnp.float32)
    vec_slab = jnp.stack([
        params["ln1_g"], params["ln1_b"], params["ln2_g"], params["ln2_b"],
        params["bq"], params["bk"], params["bv"], params["bo"], params["b2"],
        zero, zero, zero, zero, zero, zero, zero,
    ]).astype(jnp.float32)                                     # (16, D)
    b1_row = params["b1"].reshape(1, F).astype(jnp.float32)

    const2d = lambda b: (0, 0)   # weights / slabs stay resident across the grid

    grid_spec = pltpu.PrefetchScalarGridSpec(
        num_scalar_prefetch=0,
        grid=(B // TB,),
        in_specs=[
            pl.BlockSpec((TB, S, D), lambda b: (b, 0, 0)),     # x
            pl.BlockSpec((TB, 1, S), lambda b: (b, 0, 0)),     # mask
            pl.BlockSpec((D, 3 * D), const2d),                 # fused Wqkv (bf16)
            pl.BlockSpec((D, D), const2d),                     # Wo (bf16)
            pl.BlockSpec((D, F), const2d),                     # W1 (bf16)
            pl.BlockSpec((F, D), const2d),                     # W2 (bf16)
            pl.BlockSpec((16, D), const2d),                    # packed LN/bias slab
            pl.BlockSpec((1, F), const2d),                     # b1
        ],
        out_specs=[
            pl.BlockSpec((TB, S, D), lambda b: (b, 0, 0)),     # output
            pl.BlockSpec((TB, S, S), lambda b: (b, 0, 0)),     # attention weights
        ],
    )

    out, attn_w = pl.pallas_call(
        _transformer_block_kernel,
        out_shape=(
            jax.ShapeDtypeStruct((B, S, D), jnp.float32),
            jax.ShapeDtypeStruct((B, S, S), jnp.float32),
        ),
        grid_spec=grid_spec,
        compiler_params=pltpu.CompilerParams(
            # Single (or few) large steps; "parallel" would only duplicate the
            # per-core weight DMA on v7x at these sizes.
            dimension_semantics=("arbitrary",),
        ),
    )(x, mask3, wqkv, wo, w1, w2, vec_slab, b1_row)
    return out, attn_w


def _reference_transformer_block(x, mask, p):
    """Pure-JAX f32 reference with identical semantics (eval mode)."""
    def ln(h, g, b):
        mu = jnp.mean(h, -1, keepdims=True)
        var = jnp.mean((h - mu) ** 2, -1, keepdims=True)
        return (h - mu) / jnp.sqrt(var + LN_EPS) * g + b

    d = x.shape[-1]
    xn = ln(x, p["ln1_g"], p["ln1_b"])
    q = xn @ p["wq"] + p["bq"]
    k = xn @ p["wk"] + p["bk"]
    v = xn @ p["wv"] + p["bv"]
    scores = jnp.einsum("bqd,bkd->bqk", q, k) / math.sqrt(d)
    scores = jnp.where(mask[:, None, :] == 0, MASK_FILL, scores)
    w = jax.nn.softmax(scores, axis=-1)
    attn = jnp.einsum("bqk,bkd->bqd", w, v) @ p["wo"] + p["bo"]
    h = x + attn
    hn = ln(h, p["ln2_g"], p["ln2_b"])
    f = hn @ p["w1"] + p["b1"]
    f = f @ p["w2"] + p["b2"]
    return h + f, w


if __name__ == "__main__":
    key = jax.random.PRNGKey(0)
    B, S, D, F = 2, 8, 128, 256   # small, lane/sublane-aligned shapes

    keys = jax.random.split(key, 12)
    scale = 0.05
    params = {
        "ln1_g": jnp.ones((D,), jnp.float32),
        "ln1_b": jnp.zeros((D,), jnp.float32),
        "wq": jax.random.normal(keys[0], (D, D), jnp.float32) * scale,
        "bq": jax.random.normal(keys[1], (D,), jnp.float32) * scale,
        "wk": jax.random.normal(keys[2], (D, D), jnp.float32) * scale,
        "bk": jax.random.normal(keys[3], (D,), jnp.float32) * scale,
        "wv": jax.random.normal(keys[4], (D, D), jnp.float32) * scale,
        "bv": jax.random.normal(keys[5], (D,), jnp.float32) * scale,
        "wo": jax.random.normal(keys[6], (D, D), jnp.float32) * scale,
        "bo": jax.random.normal(keys[7], (D,), jnp.float32) * scale,
        "ln2_g": jnp.ones((D,), jnp.float32),
        "ln2_b": jnp.zeros((D,), jnp.float32),
        "w1": jax.random.normal(keys[8], (D, F), jnp.float32) * scale,
        "b1": jax.random.normal(keys[9], (F,), jnp.float32) * scale,
        "w2": jax.random.normal(keys[10], (F, D), jnp.float32) * scale,
        "b2": jnp.zeros((D,), jnp.float32),
    }

    kx, km = jax.random.split(keys[11])
    x = jax.random.normal(kx, (B, S, D), jnp.float32)
    # Padding-style mask: first row fully valid, second row valid for 5 tokens.
    lengths = jnp.array([S, 5], dtype=jnp.int32)
    mask = (jnp.arange(S)[None, :] < lengths[:, None]).astype(jnp.float32)

    out, attn_w = transformer_block_forward(x, mask, params)
    out = jax.block_until_ready(out)
    attn_w = jax.block_until_ready(attn_w)

    ref_out, ref_w = _reference_transformer_block(x, mask, params)

    assert out.shape == (B, S, D)
    assert attn_w.shape == (B, S, S)
    assert jnp.allclose(out, ref_out, rtol=2e-2, atol=2e-2), "output mismatch vs reference"
    assert jnp.allclose(attn_w, ref_w, rtol=2e-2, atol=2e-2), "attn weights mismatch vs reference"

    print("KERNEL_OK")
</pallas_src>

<mosaic_0001>
module attributes {stable_mosaic.version = 11 : i64} {
  func.func @_transformer_block_kernel(%arg0: i32, %arg1: memref<2x8x128xf32, #tpu.memory_space<vmem>>, %arg2: memref<2x1x8xf32, #tpu.memory_space<vmem>>, %arg3: memref<128x384xbf16, #tpu.memory_space<vmem>>, %arg4: memref<128x128xbf16, #tpu.memory_space<vmem>>, %arg5: memref<128x256xbf16, #tpu.memory_space<vmem>>, %arg6: memref<256x128xbf16, #tpu.memory_space<vmem>>, %arg7: memref<16x128xf32, #tpu.memory_space<vmem>>, %arg8: memref<1x256xf32, #tpu.memory_space<vmem>>, %arg9: memref<2x8x128xf32, #tpu.memory_space<vmem>>, %arg10: memref<2x8x8xf32, #tpu.memory_space<vmem>>) attributes {dimension_semantics = [#tpu.dimension_semantics<arbitrary>], iteration_bounds = array<i64: 1>, scalar_prefetch = 0 : i64, scratch_operands = 0 : i64, tpu.core_type = #tpu.core_type<tc>, window_params = [{transform_indices = @transform_0, window_bounds = array<i64: 2, 8, 128>}, {transform_indices = @transform_1, window_bounds = array<i64: 2, 1, 8>}, {pipeline_mode = #tpu.pipeline_mode<synchronous>, transform_indices = @transform_2, window_bounds = array<i64: 128, 384>}, {pipeline_mode = #tpu.pipeline_mode<synchronous>, transform_indices = @transform_3, window_bounds = array<i64: 128, 128>}, {pipeline_mode = #tpu.pipeline_mode<synchronous>, transform_indices = @transform_4, window_bounds = array<i64: 128, 256>}, {pipeline_mode = #tpu.pipeline_mode<synchronous>, transform_indices = @transform_5, window_bounds = array<i64: 256, 128>}, {pipeline_mode = #tpu.pipeline_mode<synchronous>, transform_indices = @transform_6, window_bounds = array<i64: 16, 128>}, {pipeline_mode = #tpu.pipeline_mode<synchronous>, transform_indices = @transform_7, window_bounds = array<i64: 1, 256>}, {transform_indices = @transform_8, window_bounds = array<i64: 2, 8, 128>}, {transform_indices = @transform_9, window_bounds = array<i64: 2, 8, 8>}]} {
    %c0 = arith.constant 0 : index
    %c0_0 = arith.constant 0 : index
    %c0_1 = arith.constant 0 : index
    %0 = vector.load %arg1[%c0, %c0_0, %c0_1] : memref<2x8x128xf32, #tpu.memory_space<vmem>>, vector<2x8x128xf32>
    %1 = vector.shape_cast %0 : vector<2x8x128xf32> to vector<16x128xf32>
    %c0_2 = arith.constant 0 : index
    %c0_3 = arith.constant 0 : index
    %c0_4 = arith.constant 0 : index
    %2 = vector.load %arg2[%c0_2, %c0_3, %c0_4] : memref<2x1x8xf32, #tpu.memory_space<vmem>>, vector<2x1x8xf32>
    %c0_5 = arith.constant 0 : index
    %c0_6 = arith.constant 0 : index
    %3 = vector.load %arg7[%c0_5, %c0_6] : memref<16x128xf32, #tpu.memory_space<vmem>>, vector<16x128xf32>
    %4 = vector.extract_strided_slice %3 {offsets = [0, 0], sizes = [1, 128], strides = [1, 1]} : vector<16x128xf32> to vector<1x128xf32>
    %5 = vector.extract_strided_slice %3 {offsets = [1, 0], sizes = [1, 128], strides = [1, 1]} : vector<16x128xf32> to vector<1x128xf32>
    %6 = vector.extract_strided_slice %3 {offsets = [2, 0], sizes = [1, 128], strides = [1, 1]} : vector<16x128xf32> to vector<1x128xf32>
    %7 = vector.extract_strided_slice %3 {offsets = [3, 0], sizes = [1, 128], strides = [1, 1]} : vector<16x128xf32> to vector<1x128xf32>
    %8 = vector.extract_strided_slice %3 {offsets = [4, 0], sizes = [1, 128], strides = [1, 1]} : vector<16x128xf32> to vector<1x128xf32>
    %9 = vector.extract_strided_slice %3 {offsets = [5, 0], sizes = [1, 128], strides = [1, 1]} : vector<16x128xf32> to vector<1x128xf32>
    %10 = vector.extract_strided_slice %3 {offsets = [6, 0], sizes = [1, 128], strides = [1, 1]} : vector<16x128xf32> to vector<1x128xf32>
    %11 = vector.extract_strided_slice %3 {offsets = [7, 0], sizes = [1, 128], strides = [1, 1]} : vector<16x128xf32> to vector<1x128xf32>
    %12 = vector.extract_strided_slice %3 {offsets = [8, 0], sizes = [1, 128], strides = [1, 1]} : vector<16x128xf32> to vector<1x128xf32>
    %c0_7 = arith.constant 0 : index
    %c0_8 = arith.constant 0 : index
    %13 = vector.load %arg8[%c0_7, %c0_8] : memref<1x256xf32, #tpu.memory_space<vmem>>, vector<1x256xf32>
    %cst = arith.constant dense<0.000000e+00> : vector<16xf32>
    %14 = vector.multi_reduction <add>, %1, %cst [1] : vector<16x128xf32> to vector<16xf32>
    %15 = vector.shape_cast %14 : vector<16xf32> to vector<16x1xf32>
    %cst_9 = arith.constant 1.280000e+02 : f32
    %16 = vector.broadcast %cst_9 : f32 to vector<16x1xf32>
    %17 = arith.divf %15, %16 : vector<16x1xf32>
    %18 = vector.broadcast %17 : vector<16x1xf32> to vector<16x128xf32>
    %19 = arith.subf %1, %18 : vector<16x128xf32>
    %20 = arith.mulf %19, %19 : vector<16x128xf32>
    %cst_10 = arith.constant dense<0.000000e+00> : vector<16xf32>
    %21 = vector.multi_reduction <add>, %20, %cst_10 [1] : vector<16x128xf32> to vector<16xf32>
    %22 = vector.shape_cast %21 : vector<16xf32> to vector<16x1xf32>
    %cst_11 = arith.constant 1.280000e+02 : f32
    %23 = vector.broadcast %cst_11 : f32 to vector<16x1xf32>
    %24 = arith.divf %22, %23 : vector<16x1xf32>
    %25 = vector.broadcast %17 : vector<16x1xf32> to vector<16x128xf32>
    %26 = arith.subf %1, %25 : vector<16x128xf32>
    %cst_12 = arith.constant 9.99999974E-6 : f32
    %27 = vector.broadcast %cst_12 : f32 to vector<16x1xf32>
    %28 = arith.addf %24, %27 : vector<16x1xf32>
    %29 = math.rsqrt %28 : vector<16x1xf32>
    %30 = vector.broadcast %29 : vector<16x1xf32> to vector<16x128xf32>
    %31 = arith.mulf %26, %30 : vector<16x128xf32>
    %32 = vector.broadcast %4 : vector<1x128xf32> to vector<16x128xf32>
    %33 = arith.mulf %31, %32 : vector<16x128xf32>
    %34 = vector.broadcast %5 : vector<1x128xf32> to vector<16x128xf32>
    %35 = arith.addf %33, %34 : vector<16x128xf32>
    %36 = arith.truncf %35 : vector<16x128xf32> to vector<16x128xbf16>
    %c0_13 = arith.constant 0 : index
    %c0_14 = arith.constant 0 : index
    %37 = vector.load %arg3[%c0_13, %c0_14] : memref<128x384xbf16, #tpu.memory_space<vmem>>, vector<128x384xbf16>
    %cst_15 = arith.constant dense<0.000000e+00> : vector<16x384xf32>
    %38 = tpu.matmul %36, %37, %cst_15 {dimension_numbers = #tpu.dot_dimension_numbers<[1], [0], [0], [1], [0, 0, 1, 1], [], []>} : vector<16x128xbf16>, vector<128x384xbf16>, vector<16x384xf32> -> vector<16x384xf32>
    %39 = vector.extract_strided_slice %38 {offsets = [0, 0], sizes = [16, 128], strides = [1, 1]} : vector<16x384xf32> to vector<16x128xf32>
    %40 = vector.broadcast %8 : vector<1x128xf32> to vector<16x128xf32>
    %41 = arith.addf %39, %40 : vector<16x128xf32>
    %42 = vector.shape_cast %41 : vector<16x128xf32> to vector<2x8x128xf32>
    %43 = arith.truncf %42 : vector<2x8x128xf32> to vector<2x8x128xbf16>
    %44 = vector.extract_strided_slice %38 {offsets = [0, 128], sizes = [16, 128], strides = [1, 1]} : vector<16x384xf32> to vector<16x128xf32>
    %45 = vector.broadcast %9 : vector<1x128xf32> to vector<16x128xf32>
    %46 = arith.addf %44, %45 : vector<16x128xf32>
    %47 = vector.shape_cast %46 : vector<16x128xf32> to vector<2x8x128xf32>
    %48 = arith.truncf %47 : vector<2x8x128xf32> to vector<2x8x128xbf16>
    %49 = vector.extract_strided_slice %38 {offsets = [0, 256], sizes = [16, 128], strides = [1, 1]} : vector<16x384xf32> to vector<16x128xf32>
    %50 = vector.broadcast %10 : vector<1x128xf32> to vector<16x128xf32>
    %51 = arith.addf %49, %50 : vector<16x128xf32>
    %52 = vector.shape_cast %51 : vector<16x128xf32> to vector<2x8x128xf32>
    %53 = arith.truncf %52 : vector<2x8x128xf32> to vector<2x8x128xbf16>
    "tpu.trace_start"() <{level = 10 : i32, message = "bqd,bkd->bqk"}> : () -> ()
    %cst_16 = arith.constant dense<0.000000e+00> : vector<2x8x8xf32>
    %54 = tpu.matmul %43, %48, %cst_16 {dimension_numbers = #tpu.dot_dimension_numbers<[2], [2], [1], [1], [0, 0, 0, 1, 1, 1], [0], [0]>} : vector<2x8x128xbf16>, vector<2x8x128xbf16>, vector<2x8x8xf32> -> vector<2x8x8xf32>
    "tpu.trace_stop"() : () -> ()
    %cst_17 = arith.constant 0.0883883461 : f32
    %55 = vector.broadcast %cst_17 : f32 to vector<2x8x8xf32>
    %56 = arith.mulf %54, %55 : vector<2x8x8xf32>
    %cst_18 = arith.constant 0.000000e+00 : f32
    %57 = vector.broadcast %cst_18 : f32 to vector<2x1x8xf32>
    %58 = arith.cmpf oeq, %2, %57 : vector<2x1x8xf32>
    %cst_19 = arith.constant -1.000000e+09 : f32
    %59 = vector.shape_cast %58 : vector<2x1x8xi1> to vector<2x1x8xi1>
    %60 = vector.broadcast %59 : vector<2x1x8xi1> to vector<2x8x8xi1>
    %61 = vector.broadcast %cst_19 : f32 to vector<2x8x8xf32>
    %62 = arith.select %60, %61, %56 : vector<2x8x8xi1>, vector<2x8x8xf32>
    %cst_20 = arith.constant dense<0xFF800000> : vector<2x8xf32>
    %63 = vector.multi_reduction <maximumf>, %62, %cst_20 [2] : vector<2x8x8xf32> to vector<2x8xf32>
    %64 = vector.shape_cast %63 : vector<2x8xf32> to vector<2x8x1xf32>
    %65 = vector.broadcast %64 : vector<2x8x1xf32> to vector<2x8x8xf32>
    %66 = arith.subf %62, %65 : vector<2x8x8xf32>
    %67 = math.exp %66 : vector<2x8x8xf32>
    %cst_21 = arith.constant dense<0.000000e+00> : vector<2x8xf32>
    %68 = vector.multi_reduction <add>, %67, %cst_21 [2] : vector<2x8x8xf32> to vector<2x8xf32>
    %69 = vector.shape_cast %68 : vector<2x8xf32> to vector<2x8x1xf32>
    %70 = tpu.reciprocal %69 {approx = true} : vector<2x8x1xf32> -> vector<2x8x1xf32>
    %71 = vector.broadcast %70 : vector<2x8x1xf32> to vector<2x8x8xf32>
    %72 = arith.mulf %67, %71 : vector<2x8x8xf32>
    %c0_22 = arith.constant 0 : index
    %c0_23 = arith.constant 0 : index
    %c0_24 = arith.constant 0 : index
    %73 = vector.load %arg10[%c0_22, %c0_23, %c0_24] : memref<2x8x8xf32, #tpu.memory_space<vmem>>, vector<2x8x8xf32>
    tpu.vector_store %arg10[%c0_22, %c0_23, %c0_24], %72 {strides = array<i32>} : memref<2x8x8xf32, #tpu.memory_space<vmem>>, vector<2x8x8xf32>,
    %74 = arith.truncf %72 : vector<2x8x8xf32> to vector<2x8x8xbf16>
    "tpu.trace_start"() <{level = 10 : i32, message = "bqk,bkd->bqd"}> : () -> ()
    %cst_25 = arith.constant dense<0.000000e+00> : vector<2x8x128xf32>
    %75 = tpu.matmul %74, %53, %cst_25 {dimension_numbers = #tpu.dot_dimension_numbers<[2], [1], [1], [2], [0, 0, 0, 1, 1, 2], [0], [0]>} : vector<2x8x8xbf16>, vector<2x8x128xbf16>, vector<2x8x128xf32> -> vector<2x8x128xf32>
    "tpu.trace_stop"() : () -> ()
    %76 = vector.shape_cast %75 : vector<2x8x128xf32> to vector<16x128xf32>
    %77 = arith.truncf %76 : vector<16x128xf32> to vector<16x128xbf16>
    %c0_26 = arith.constant 0 : index
    %c0_27 = arith.constant 0 : index
    %78 = vector.load %arg4[%c0_26, %c0_27] : memref<128x128xbf16, #tpu.memory_space<vmem>>, vector<128x128xbf16>
    %cst_28 = arith.constant dense<0.000000e+00> : vector<16x128xf32>
    %79 = tpu.matmul %77, %78, %cst_28 {dimension_numbers = #tpu.dot_dimension_numbers<[1], [0], [0], [1], [0, 0, 1, 1], [], []>} : vector<16x128xbf16>, vector<128x128xbf16>, vector<16x128xf32> -> vector<16x128xf32>
    %80 = vector.broadcast %11 : vector<1x128xf32> to vector<16x128xf32>
    %81 = arith.addf %79, %80 : vector<16x128xf32>
    %82 = arith.addf %1, %81 : vector<16x128xf32>
    %cst_29 = arith.constant dense<0.000000e+00> : vector<16xf32>
    %83 = vector.multi_reduction <add>, %82, %cst_29 [1] : vector<16x128xf32> to vector<16xf32>
    %84 = vector.shape_cast %83 : vector<16xf32> to vector<16x1xf32>
    %cst_30 = arith.constant 1.280000e+02 : f32
    %85 = vector.broadcast %cst_30 : f32 to vector<16x1xf32>
    %86 = arith.divf %84, %85 : vector<16x1xf32>
    %87 = vector.broadcast %86 : vector<16x1xf32> to vector<16x128xf32>
    %88 = arith.subf %82, %87 : vector<16x128xf32>
    %89 = arith.mulf %88, %88 : vector<16x128xf32>
    %cst_31 = arith.constant dense<0.000000e+00> : vector<16xf32>
    %90 = vector.multi_reduction <add>, %89, %cst_31 [1] : vector<16x128xf32> to vector<16xf32>
    %91 = vector.shape_cast %90 : vector<16xf32> to vector<16x1xf32>
    %cst_32 = arith.constant 1.280000e+02 : f32
    %92 = vector.broadcast %cst_32 : f32 to vector<16x1xf32>
    %93 = arith.divf %91, %92 : vector<16x1xf32>
    %94 = vector.broadcast %86 : vector<16x1xf32> to vector<16x128xf32>
    %95 = arith.subf %82, %94 : vector<16x128xf32>
    %cst_33 = arith.constant 9.99999974E-6 : f32
    %96 = vector.broadcast %cst_33 : f32 to vector<16x1xf32>
    %97 = arith.addf %93, %96 : vector<16x1xf32>
    %98 = math.rsqrt %97 : vector<16x1xf32>
    %99 = vector.broadcast %98 : vector<16x1xf32> to vector<16x128xf32>
    %100 = arith.mulf %95, %99 : vector<16x128xf32>
    %101 = vector.broadcast %6 : vector<1x128xf32> to vector<16x128xf32>
    %102 = arith.mulf %100, %101 : vector<16x128xf32>
    %103 = vector.broadcast %7 : vector<1x128xf32> to vector<16x128xf32>
    %104 = arith.addf %102, %103 : vector<16x128xf32>
    %105 = arith.truncf %104 : vector<16x128xf32> to vector<16x128xbf16>
    %c0_34 = arith.constant 0 : index
    %c0_35 = arith.constant 0 : index
    %106 = vector.load %arg5[%c0_34, %c0_35] : memref<128x256xbf16, #tpu.memory_space<vmem>>, vector<128x256xbf16>
    %cst_36 = arith.constant dense<0.000000e+00> : vector<16x256xf32>
    %107 = tpu.matmul %105, %106, %cst_36 {dimension_numbers = #tpu.dot_dimension_numbers<[1], [0], [0], [1], [0, 0, 1, 1], [], []>} : vector<16x128xbf16>, vector<128x256xbf16>, vector<16x256xf32> -> vector<16x256xf32>
    %108 = vector.broadcast %13 : vector<1x256xf32> to vector<16x256xf32>
    %109 = arith.addf %107, %108 : vector<16x256xf32>
    %110 = arith.truncf %109 : vector<16x256xf32> to vector<16x256xbf16>
    %c0_37 = arith.constant 0 : index
    %c0_38 = arith.constant 0 : index
    %111 = vector.load %arg6[%c0_37, %c0_38] : memref<256x128xbf16, #tpu.memory_space<vmem>>, vector<256x128xbf16>
    %cst_39 = arith.constant dense<0.000000e+00> : vector<16x128xf32>
    %112 = tpu.matmul %110, %111, %cst_39 {dimension_numbers = #tpu.dot_dimension_numbers<[1], [0], [0], [1], [0, 0, 1, 1], [], []>} : vector<16x256xbf16>, vector<256x128xbf16>, vector<16x128xf32> -> vector<16x128xf32>
    %113 = vector.broadcast %12 : vector<1x128xf32> to vector<16x128xf32>
    %114 = arith.addf %112, %113 : vector<16x128xf32>
    %115 = arith.addf %82, %114 : vector<16x128xf32>
    %116 = vector.shape_cast %115 : vector<16x128xf32> to vector<2x8x128xf32>
    %c0_40 = arith.constant 0 : index
    %c0_41 = arith.constant 0 : index
    %c0_42 = arith.constant 0 : index
    %117 = vector.load %arg9[%c0_40, %c0_41, %c0_42] : memref<2x8x128xf32, #tpu.memory_space<vmem>>, vector<2x8x128xf32>
    tpu.vector_store %arg9[%c0_40, %c0_41, %c0_42], %116 {strides = array<i32>} : memref<2x8x128xf32, #tpu.memory_space<vmem>>, vector<2x8x128xf32>,
    return
  }
  func.func @transform_0(%arg0: i32) -> (i32, i32, i32) {
    %c0_i32 = arith.constant 0 : i32
    %c0_i32_0 = arith.constant 0 : i32
    %c0_i32_1 = arith.constant 0 : i32
    return %arg0, %c0_i32, %c0_i32_0 : i32, i32, i32
  }
  func.func @transform_1(%arg0: i32) -> (i32, i32, i32) {
    %c0_i32 = arith.constant 0 : i32
    %c0_i32_0 = arith.constant 0 : i32
    %c0_i32_1 = arith.constant 0 : i32
    return %arg0, %c0_i32, %c0_i32_0 : i32, i32, i32
  }
  func.func @transform_2(%arg0: i32) -> (i32, i32) {
    %c0_i32 = arith.constant 0 : i32
    %c0_i32_0 = arith.constant 0 : i32
    %c0_i32_1 = arith.constant 0 : i32
    return %c0_i32, %c0_i32_0 : i32, i32
  }
  func.func @transform_3(%arg0: i32) -> (i32, i32) {
    %c0_i32 = arith.constant 0 : i32
    %c0_i32_0 = arith.constant 0 : i32
    %c0_i32_1 = arith.constant 0 : i32
    return %c0_i32, %c0_i32_0 : i32, i32
  }
  func.func @transform_4(%arg0: i32) -> (i32, i32) {
    %c0_i32 = arith.constant 0 : i32
    %c0_i32_0 = arith.constant 0 : i32
    %c0_i32_1 = arith.constant 0 : i32
    return %c0_i32, %c0_i32_0 : i32, i32
  }
  func.func @transform_5(%arg0: i32) -> (i32, i32) {
    %c0_i32 = arith.constant 0 : i32
    %c0_i32_0 = arith.constant 0 : i32
    %c0_i32_1 = arith.constant 0 : i32
    return %c0_i32, %c0_i32_0 : i32, i32
  }
  func.func @transform_6(%arg0: i32) -> (i32, i32) {
    %c0_i32 = arith.constant 0 : i32
    %c0_i32_0 = arith.constant 0 : i32
    %c0_i32_1 = arith.constant 0 : i32
    return %c0_i32, %c0_i32_0 : i32, i32
  }
  func.func @transform_7(%arg0: i32) -> (i32, i32) {
    %c0_i32 = arith.constant 0 : i32
    %c0_i32_0 = arith.constant 0 : i32
    %c0_i32_1 = arith.constant 0 : i32
    return %c0_i32, %c0_i32_0 : i32, i32
  }
  func.func @transform_8(%arg0: i32) -> (i32, i32, i32) {
    %c0_i32 = arith.constant 0 : i32
    %c0_i32_0 = arith.constant 0 : i32
    %c0_i32_1 = arith.constant 0 : i32
    return %arg0, %c0_i32, %c0_i32_0 : i32, i32, i32
  }
  func.func @transform_9(%arg0: i32) -> (i32, i32, i32) {
    %c0_i32 = arith.constant 0 : i32
    %c0_i32_0 = arith.constant 0 : i32
    %c0_i32_1 = arith.constant 0 : i32
    return %arg0, %c0_i32, %c0_i32_0 : i32, i32, i32
  }
}

</mosaic_0001>

<llo_original>
// kernel: tpu_custom_call.1
$region0: #{tpu_custom_call.1}
  #allocation0 [shape = 'u32[]', space=smem, size = 0x4, offset = 0x4, fixed_abs, tag = 'smem constant byte address 0x4 - core index']
  #allocation1 [shape = 'u32[144,128]{1,0:T(1,128)}', space=vmem, size = 0x12000, scoped, tag = 'internal scratch']
  %s0 = inlined_call_operand.hbm [shape: f32[2,8,128], index: 0, kind: input, shape index: {}]
  %s1 = inlined_call_operand.vmem [shape: f32[2,1,8], index: 1, kind: input, shape index: {}]
  %s2 = inlined_call_operand.hbm [shape: bf16[128,384], index: 2, kind: input, shape index: {}]
  %s3 = inlined_call_operand.hbm [shape: bf16[128,128], index: 3, kind: input, shape index: {}]
  %s4 = inlined_call_operand.hbm [shape: bf16[128,256], index: 4, kind: input, shape index: {}]
  %s5 = inlined_call_operand.hbm [shape: bf16[256,128], index: 5, kind: input, shape index: {}]
  %s6 = inlined_call_operand.vmem [shape: f32[16,128], index: 6, kind: input, shape index: {}]
  %s7 = inlined_call_operand.vmem [shape: f32[1,256], index: 7, kind: input, shape index: {}]
  %s8 = inlined_call_operand.hbm [shape: f32[2,8,128], index: 8, kind: output, shape index: {0}]
  %s9 = inlined_call_operand.hbm [shape: f32[2,8,8], index: 9, kind: output, shape index: {1}]
  %10 = xla_tuple %s8, %s9
  %s11 = sld [smem:[#allocation0]]
  $region70: #{tpu_custom_call.1} parent=0
    _
  %s13 = ssub.s32 1, %s11
  %s14 = scalar_select 0, %s13, %s11
  $region1: #{tpu_custom_call.1} parent=0
    #allocation2 [shape = 'u8[8192]{0}', space=vmem, size = 0x2000, scoped, tag = 'input window, operand 0, single buffered']
    #allocation3 [shape = 's32[1]{0}', space=sflag, size = 0x4, scoped, tag = 'scoped memory for tpu_custom_call.1']
    #allocation4 [shape = 's32[1]{0}', space=sflag, size = 0x4, scoped, tag = 'scoped memory for tpu_custom_call.1']
    #allocation5 [shape = 'u8[98304]{0}', space=vmem, size = 0x18000, scoped, tag = 'input window, operand 2, single buffered']
    #allocation6 [shape = 's32[1]{0}', space=sflag, size = 0x4, scoped, tag = 'scoped memory for tpu_custom_call.1']
    #allocation7 [shape = 'u8[32768]{0}', space=vmem, size = 0x8000, scoped, tag = 'input window, operand 3, single buffered']
    #allocation8 [shape = 'u8[65536]{0}', space=vmem, size = 0x10000, scoped, tag = 'input window, operand 4, single buffered']
    #allocation9 [shape = 's32[1]{0}', space=sflag, size = 0x4, scoped, tag = 'scoped memory for tpu_custom_call.1']
    #allocation10 [shape = 'u8[65536]{0}', space=vmem, size = 0x10000, scoped, tag = 'input window, operand 5, single buffered']
    #allocation11 [shape = 'u8[8192]{0}', space=vmem, size = 0x2000, scoped, tag = 'output window, operand 0, single buffered']
    #allocation12 [shape = 'u8[8192]{0}', space=vmem, size = 0x2000, scoped, tag = 'output window, operand 1, single buffered']
    #allocation13 [shape = 's32[1]{0}', space=sflag, size = 0x4, scoped, tag = 'scoped memory for tpu_custom_call.1']
    %15 = vsyncpa [#allocation3], 0
    %16 = vsyncpa [#allocation6], 0
    %17 = vsyncpa [#allocation9], 0
    %18 = vsyncpa [#allocation4], 0
    %19 = vsyncpa [#allocation13], 0
    // Predicated region
    $region2: #{tpu_custom_call.1} parent=1 // pred_check
      _
    $region3: #{tpu_custom_call.1} parent=1 // pred_check_branch
      %21 = sbr.rel (0) target = $region5
    $region4: #{tpu_custom_call.1} parent=1 // pred_region
      %s23 = ssub.s32 256, 256
      %24 = vsyncadd [#allocation3], %s23
      %s25 = sshll.u32 [#allocation2], 4
      %s26 = int_to_ptr.vmem [resolvable:$true] %s25
      %31 = dma.hbm_to_vmem [thread:$0]  %s0, 256, %s26, [#allocation3], 128, 128, 8
    $region5: #{tpu_custom_call.1} parent=1 // pred_fallthru
      _
    // Predicated region
    $region6: #{tpu_custom_call.1} parent=1 // pred_check
      _
    $region7: #{tpu_custom_call.1} parent=1 // pred_check_branch
      %33 = sbr.rel (0) target = $region9
    $region8: #{tpu_custom_call.1} parent=1 // pred_region
      _
    $region9: #{tpu_custom_call.1} parent=1 // pred_fallthru
      _
    // Predicated region
    $region10: #{tpu_custom_call.1} parent=1 // pred_check
      _
    $region11: #{tpu_custom_call.1} parent=1 // pred_check_branch
      %35 = sbr.rel (0) target = $region13
    $region12: #{tpu_custom_call.1} parent=1 // pred_region
      %s37 = ssub.s32 3072, 3072
      %38 = vsyncadd [#allocation6], %s37
      %s39 = sshll.u32 [#allocation5], 4
      %s40 = int_to_ptr.vmem [resolvable:$true] %s39
      %45 = dma.hbm_to_vmem [thread:$0]  %s2, 3072, %s40, [#allocation6], 192, 192, 12
    $region13: #{tpu_custom_call.1} parent=1 // pred_fallthru
      _
    // Predicated region
    $region14: #{tpu_custom_call.1} parent=1 // pred_check
      _
    $region15: #{tpu_custom_call.1} parent=1 // pred_check_branch
      %47 = sbr.rel (0) target = $region17
    $region16: #{tpu_custom_call.1} parent=1 // pred_region
      %s49 = ssub.s32 1024, 1024
      %50 = vsyncadd [#allocation6], %s49
      %s51 = sshll.u32 [#allocation7], 4
      %s52 = int_to_ptr.vmem [resolvable:$true] %s51
      %57 = dma.hbm_to_vmem [thread:$0]  %s3, 1024, %s52, [#allocation6], 64, 64, 4
    $region17: #{tpu_custom_call.1} parent=1 // pred_fallthru
      _
    // Predicated region
    $region18: #{tpu_custom_call.1} parent=1 // pred_check
      _
    $region19: #{tpu_custom_call.1} parent=1 // pred_check_branch
      %59 = sbr.rel (0) target = $region21
    $region20: #{tpu_custom_call.1} parent=1 // pred_region
      %s61 = ssub.s32 2048, 2048
      %62 = vsyncadd [#allocation9], %s61
      %s63 = sshll.u32 [#allocation8], 4
      %s64 = int_to_ptr.vmem [resolvable:$true] %s63
      %69 = dma.hbm_to_vmem [thread:$0]  %s4, 2048, %s64, [#allocation9], 128, 128, 8
    $region21: #{tpu_custom_call.1} parent=1 // pred_fallthru
      _
    // Predicated region
    $region22: #{tpu_custom_call.1} parent=1 // pred_check
      _
    $region23: #{tpu_custom_call.1} parent=1 // pred_check_branch
      %71 = sbr.rel (0) target = $region25
    $region24: #{tpu_custom_call.1} parent=1 // pred_region
      %s73 = ssub.s32 2048, 2048
      %74 = vsyncadd [#allocation9], %s73
      %s75 = sshll.u32 [#allocation10], 4
      %s76 = int_to_ptr.vmem [resolvable:$true] %s75
      %81 = dma.hbm_to_vmem [thread:$0]  %s5, 2048, %s76, [#allocation9], 64, 64, 4
    $region25: #{tpu_custom_call.1} parent=1 // pred_fallthru
      _
    // Predicated region
    $region26: #{tpu_custom_call.1} parent=1 // pred_check
      _
    $region27: #{tpu_custom_call.1} parent=1 // pred_check_branch
      %83 = sbr.rel (0) target = $region29
    $region28: #{tpu_custom_call.1} parent=1 // pred_region
      _
    $region29: #{tpu_custom_call.1} parent=1 // pred_fallthru
      _
    // Predicated region
    $region30: #{tpu_custom_call.1} parent=1 // pred_check
      _
    $region31: #{tpu_custom_call.1} parent=1 // pred_check_branch
      %85 = sbr.rel (0) target = $region33
    $region32: #{tpu_custom_call.1} parent=1 // pred_region
      _
    $region33: #{tpu_custom_call.1} parent=1 // pred_fallthru
      _
    // Predicated region
    $region34: #{tpu_custom_call.1} parent=1 // pred_check
      _
    $region35: #{tpu_custom_call.1} parent=1 // pred_check_branch
      %87 = sbr.rel (0) target = $region37
    $region36: #{tpu_custom_call.1} parent=1 // pred_region
      %88 = dma.done [#allocation3], 256
    $region37: #{tpu_custom_call.1} parent=1 // pred_fallthru
      _
    // Predicated region
    $region38: #{tpu_custom_call.1} parent=1 // pred_check
      _
    $region39: #{tpu_custom_call.1} parent=1 // pred_check_branch
      %90 = sbr.rel (0) target = $region41
    $region40: #{tpu_custom_call.1} parent=1 // pred_region
      %91 = dma.done [#allocation6], 3072
    $region41: #{tpu_custom_call.1} parent=1 // pred_fallthru
      _
    // Predicated region
    $region42: #{tpu_custom_call.1} parent=1 // pred_check
      _
    $region43: #{tpu_custom_call.1} parent=1 // pred_check_branch
      %93 = sbr.rel (0) target = $region45
    $region44: #{tpu_custom_call.1} parent=1 // pred_region
      %94 = dma.done [#allocation6], 1024
    $region45: #{tpu_custom_call.1} parent=1 // pred_fallthru
      _
    // Predicated region
    $region46: #{tpu_custom_call.1} parent=1 // pred_check
      _
    $region47: #{tpu_custom_call.1} parent=1 // pred_check_branch
      %96 = sbr.rel (0) target = $region49
    $region48: #{tpu_custom_call.1} parent=1 // pred_region
      %97 = dma.done [#allocation9], 2048
    $region49: #{tpu_custom_call.1} parent=1 // pred_fallthru
      _
    // Predicated region
    $region50: #{tpu_custom_call.1} parent=1 // pred_check
      _
    $region51: #{tpu_custom_call.1} parent=1 // pred_check_branch
      %99 = sbr.rel (0) target = $region53
    $region52: #{tpu_custom_call.1} parent=1 // pred_region
      %100 = dma.done [#allocation9], 2048
    $region53: #{tpu_custom_call.1} parent=1 // pred_fallthru
      _
    %v102 = vld [vmem:[#allocation2] sm:$0xff]
    %v103 = vld [vmem:[#allocation2 + $0x8] sm:$0xff]
    %v104 = vld [vmem:[%s1] sm:$0x1]
    %v105 = vld [vmem:[%s1 + $0x1] sm:$0x1]
    %v106 = vld [vmem:[%s6] sm:$0xff]
    %v107 = vld [vmem:[%s6 + $0x8] sm:$0xff]
    %v108 = vld [vmem:[%s7] sm:$0x3]
    %109 = vadd.xlane.f32.xlu0 %v102
    %v110 = vpop.xlane.xlu0 %109
    %111 = vadd.xlane.f32.xlu0 %v103
    %v112 = vpop.xlane.xlu0 %111
    %v113 = vrcp.pop 128.0
    %v114 = vmul.f32 %v110, %v113
    %v115 = vmul.f32 %v112, %v113
    %v116 = vsub.f32 %v102, %v114
    %v117 = vsub.f32 %v103, %v115
    %v118 = vmul.f32 %v116, %v116
    %v119 = vmul.f32 %v117, %v117
    %120 = vadd.xlane.f32.xlu0 %v118
    %v121 = vpop.xlane.xlu0 %120
    %122 = vadd.xlane.f32.xlu0 %v119
    %v123 = vpop.xlane.xlu0 %122
    %v124 = vmul.f32 %v121, %v113
    %v125 = vmul.f32 %v123, %v113
    %v126 = vadd.f32 %v124, 1e-05
    %v127 = vadd.f32 %v125, 1e-05
    %v128 = vrsqrt.pop %v126
    %v129 = vrsqrt.pop %v127
    %v130 = vmul.f32 %v116, %v128
    %v131 = vmul.f32 %v117, %v129
    %v132 = vlaneseq
    %v133 = vshrl.u32 %v132, 7
    %v134 = vsub.s32 0, %v133
    %v135 = vrot.slane %v106, %v134
    %v136 = vmul.f32 %v130, %v135
    %v137 = vmul.f32 %v131, %v135
    %v138 = vlaneseq
    %v139 = vshrl.u32 %v138, 7
    %v140 = vsub.s32 1, %v139
    %v141 = vrot.slane %v106, %v140
    %v142 = vadd.f32 %v136, %v141
    %v143 = vadd.f32 %v137, %v141
    %v144 = vpack.c.bf16 %v143, %v142
    %v145 = vld [vmem:[#allocation5] sm:$0xff]
    %v146 = vld [vmem:[#allocation5 + $0x8] sm:$0xf]
    %v147 = vld [vmem:[#allocation5 + $0xc] sm:$0xff]
    %v148 = vld [vmem:[#allocation5 + $0x14] sm:$0xf]
    %v149 = vld [vmem:[#allocation5 + $0x18] sm:$0xff]
    %v150 = vld [vmem:[#allocation5 + $0x20] sm:$0xf]
    %v151 = vld [vmem:[#allocation5 + $0x24] sm:$0xff]
    %v152 = vld [vmem:[#allocation5 + $0x2c] sm:$0xf]
    %v153 = vld [vmem:[#allocation5 + $0x30] sm:$0xff]
    %v154 = vld [vmem:[#allocation5 + $0x38] sm:$0xf]
    %v155 = vld [vmem:[#allocation5 + $0x3c] sm:$0xff]
    %v156 = vld [vmem:[#allocation5 + $0x44] sm:$0xf]
    %v157 = vld [vmem:[#allocation5 + $0x48] sm:$0xff]
    %v158 = vld [vmem:[#allocation5 + $0x50] sm:$0xf]
    %v159 = vld [vmem:[#allocation5 + $0x54] sm:$0xff]
    %v160 = vld [vmem:[#allocation5 + $0x5c] sm:$0xf]
    %v161 = vld [vmem:[#allocation5 + $0x60] sm:$0xff]
    %v162 = vld [vmem:[#allocation5 + $0x68] sm:$0xf]
    %v163 = vld [vmem:[#allocation5 + $0x6c] sm:$0xff]
    %v164 = vld [vmem:[#allocation5 + $0x74] sm:$0xf]
    %v165 = vld [vmem:[#allocation5 + $0x78] sm:$0xff]
    %v166 = vld [vmem:[#allocation5 + $0x80] sm:$0xf]
    %v167 = vld [vmem:[#allocation5 + $0x84] sm:$0xff]
    %v168 = vld [vmem:[#allocation5 + $0x8c] sm:$0xf]
    %v169 = vld [vmem:[#allocation5 + $0x90] sm:$0xff]
    %v170 = vld [vmem:[#allocation5 + $0x98] sm:$0xf]
    %v171 = vld [vmem:[#allocation5 + $0x9c] sm:$0xff]
    %v172 = vld [vmem:[#allocation5 + $0xa4] sm:$0xf]
    %v173 = vld [vmem:[#allocation5 + $0xa8] sm:$0xff]
    %v174 = vld [vmem:[#allocation5 + $0xb0] sm:$0xf]
    %v175 = vld [vmem:[#allocation5 + $0xb4] sm:$0xff]
    %v176 = vld [vmem:[#allocation5 + $0xbc] sm:$0xf]
    %v209 = vunpack.c.l.b16 %v145
    %v210 = vunpack.c.h.b16 %v145
    %v211 = vunpack.c.l.b16 %v146
    %v212 = vunpack.c.l.b16 %v147
    %v213 = vunpack.c.h.b16 %v147
    %v214 = vunpack.c.l.b16 %v148
    %v215 = vunpack.c.l.b16 %v149
    %v216 = vunpack.c.h.b16 %v149
    %v217 = vunpack.c.l.b16 %v150
    %v218 = vunpack.c.l.b16 %v151
    %v219 = vunpack.c.h.b16 %v151
    %v220 = vunpack.c.l.b16 %v152
    %v221 = vunpack.c.l.b16 %v153
    %v222 = vunpack.c.h.b16 %v153
    %v223 = vunpack.c.l.b16 %v154
    %v224 = vunpack.c.l.b16 %v155
    %v225 = vunpack.c.h.b16 %v155
    %v226 = vunpack.c.l.b16 %v156
    %v227 = vunpack.c.l.b16 %v157
    %v228 = vunpack.c.h.b16 %v157
    %v229 = vunpack.c.l.b16 %v158
    %v230 = vunpack.c.l.b16 %v159
    %v231 = vunpack.c.h.b16 %v159
    %v232 = vunpack.c.l.b16 %v160
    %v233 = vunpack.c.l.b16 %v161
    %v234 = vunpack.c.h.b16 %v161
    %v235 = vunpack.c.l.b16 %v162
    %v236 = vunpack.c.l.b16 %v163
    %v237 = vunpack.c.h.b16 %v163
    %v238 = vunpack.c.l.b16 %v164
    %v239 = vunpack.c.l.b16 %v165
    %v240 = vunpack.c.h.b16 %v165
    %v241 = vunpack.c.l.b16 %v166
    %v242 = vunpack.c.l.b16 %v167
    %v243 = vunpack.c.h.b16 %v167
    %v244 = vunpack.c.l.b16 %v168
    %v245 = vunpack.c.l.b16 %v169
    %v246 = vunpack.c.h.b16 %v169
    %v247 = vunpack.c.l.b16 %v170
    %v248 = vunpack.c.l.b16 %v171
    %v249 = vunpack.c.h.b16 %v171
    %v250 = vunpack.c.l.b16 %v172
    %v251 = vunpack.c.l.b16 %v173
    %v252 = vunpack.c.h.b16 %v173
    %v253 = vunpack.c.l.b16 %v174
    %v254 = vunpack.c.l.b16 %v175
    %v255 = vunpack.c.h.b16 %v175
    %v256 = vunpack.c.l.b16 %v176
    %v257 = vpack.c.b16 %v212, %v209
    %v258 = vpack.c.b16 %v213, %v210
    %v259 = vpack.c.b16 %v214, %v211
    %v260 = vpack.c.b16 %v218, %v215
    %v261 = vpack.c.b16 %v219, %v216
    %v262 = vpack.c.b16 %v220, %v217
    %v263 = vpack.c.b16 %v224, %v221
    %v264 = vpack.c.b16 %v225, %v222
    %v265 = vpack.c.b16 %v226, %v223
    %v266 = vpack.c.b16 %v230, %v227
    %v267 = vpack.c.b16 %v231, %v228
    %v268 = vpack.c.b16 %v232, %v229
    %v269 = vpack.c.b16 %v236, %v233
    %v270 = vpack.c.b16 %v237, %v234
    %v271 = vpack.c.b16 %v238, %v235
    %v272 = vpack.c.b16 %v242, %v239
    %v273 = vpack.c.b16 %v243, %v240
    %v274 = vpack.c.b16 %v244, %v241
    %v275 = vpack.c.b16 %v248, %v245
    %v276 = vpack.c.b16 %v249, %v246
    %v277 = vpack.c.b16 %v250, %v247
    %v278 = vpack.c.b16 %v254, %v251
    %v279 = vpack.c.b16 %v255, %v252
    %v280 = vpack.c.b16 %v256, %v253
    %305 = vmatprep.subr.bf16.mxu0 %v258
    %306 = vmatpush1.bf16.msra.mxu0 %v257
    %307 = vmatprep.subr.bf16.mxu0 %v261
    %308 = vmatpush1.bf16.msra.mxu0 %v260
    %309 = vmatprep.subr.bf16.mxu0 %v264
    %310 = vmatpush1.bf16.msra.mxu0 %v263
    %311 = vmatprep.subr.bf16.mxu0 %v267
    %312 = vmatpush1.bf16.msra.mxu0 %v266
    %313 = vmatprep.subr.bf16.mxu0 %v270
    %314 = vmatpush1.bf16.msra.mxu0 %v269
    %315 = vmatprep.subr.bf16.mxu0 %v273
    %316 = vmatpush1.bf16.msra.mxu0 %v272
    %317 = vmatprep.subr.bf16.mxu0 %v276
    %318 = vmatpush1.bf16.msra.mxu0 %v275
    %319 = vmatprep.subr.bf16.mxu0 %v279
    %320 = vmatpush1.bf16.msra.mxu0 %v278
    %321 = vmatprep.subr.bf16.mxu0 0
    %322 = vmatpush1.bf16.msra.mxu0 0
    %323 = vmatprep.subr.bf16.mxu0 0
    %324 = vmatpush1.bf16.msra.mxu0 0
    %325 = vmatprep.subr.bf16.mxu0 0
    %326 = vmatpush1.bf16.msra.mxu0 0
    %327 = vmatprep.subr.bf16.mxu0 0
    %328 = vmatpush1.bf16.msra.mxu0 0
    %329 = vmatprep.subr.bf16.mxu0 0
    %330 = vmatpush1.bf16.msra.mxu0 0
    %331 = vmatprep.subr.bf16.mxu0 0
    %332 = vmatpush1.bf16.msra.mxu0 0
    %333 = vmatprep.subr.bf16.mxu0 0
    %334 = vmatpush1.bf16.msra.mxu0 0
    %335 = vmatprep.subr.bf16.mxu0 0
    %336 = vmatpush1.bf16.msra.mxu0 0
    %337 = vmatprep.mubr.bf16.mxu0 0
    %338 = vmatmul.mubr.bf16.gmra.mrb[0].mxu0 %v144
    %v339 = vpop.f32.mrb[0].mxu0
    %v340 = vadd.f32 0.0, %v339
    %v341 = vpop.f32.mrb[0].mxu0
    %v342 = vadd.f32 0.0, %v341
    %v343 = vpop.f32.mrb[0].mxu0
    %v344 = vadd.f32 0.0, %v343
    %v345 = vpop.f32.mrb[0].mxu0
    %v346 = vadd.f32 0.0, %v345
    %347 = vdwg.mxu0
    %348 = vmatprep.subr.bf16.mxu0 0
    %349 = vmatpush1.bf16.msra.mxu0 %v259
    %350 = vmatprep.subr.bf16.mxu0 0
    %351 = vmatpush1.bf16.msra.mxu0 %v262
    %352 = vmatprep.subr.bf16.mxu0 0
    %353 = vmatpush1.bf16.msra.mxu0 %v265
    %354 = vmatprep.subr.bf16.mxu0 0
    %355 = vmatpush1.bf16.msra.mxu0 %v268
    %356 = vmatprep.subr.bf16.mxu0 0
    %357 = vmatpush1.bf16.msra.mxu0 %v271
    %358 = vmatprep.subr.bf16.mxu0 0
    %359 = vmatpush1.bf16.msra.mxu0 %v274
    %360 = vmatprep.subr.bf16.mxu0 0
    %361 = vmatpush1.bf16.msra.mxu0 %v277
    %362 = vmatprep.subr.bf16.mxu0 0
    %363 = vmatpush1.bf16.msra.mxu0 %v280
    %364 = vmatprep.subr.bf16.mxu0 0
    %365 = vmatpush1.bf16.msra.mxu0 0
    %366 = vmatprep.subr.bf16.mxu0 0
    %367 = vmatpush1.bf16.msra.mxu0 0
    %368 = vmatprep.subr.bf16.mxu0 0
    %369 = vmatpush1.bf16.msra.mxu0 0
    %370 = vmatprep.subr.bf16.mxu0 0
    %371 = vmatpush1.bf16.msra.mxu0 0
    %372 = vmatprep.subr.bf16.mxu0 0
    %373 = vmatpush1.bf16.msra.mxu0 0
    %374 = vmatprep.subr.bf16.mxu0 0
    %375 = vmatpush1.bf16.msra.mxu0 0
    %376 = vmatprep.subr.bf16.mxu0 0
    %377 = vmatpush1.bf16.msra.mxu0 0
    %378 = vmatprep.subr.bf16.mxu0 0
    %379 = vmatpush1.bf16.msra.mxu0 0
    %380 = vmatprep.mubr.bf16.mxu0 0
    %381 = vmatmul.mubr.bf16.gmra.mrb[0].mxu0 %v144
    %v382 = vpop.f32.mrb[0].mxu0
    %v383 = vadd.f32 0.0, %v382
    %v384 = vpop.f32.mrb[0].mxu0
    %v385 = vpop.f32.mrb[0].mxu0
    %v386 = vadd.f32 0.0, %v385
    %v387 = vpop.f32.mrb[0].mxu0
    %388 = vdwg.mxu0
    %v389 = vlaneseq
    %v390 = vshrl.u32 %v389, 7
    %v391 = vsub.s32 4, %v390
    %v392 = vrot.slane %v106, %v391
    %v393 = vadd.f32 %v340, %v392
    %v394 = vadd.f32 %v344, %v392
    %v395 = vpack.c.bf16 %v393, %v393
    %v396 = vpack.c.bf16 %v394, %v394
    %v397 = vlaneseq
    %v398 = vshrl.u32 %v397, 7
    %v399 = vsub.s32 5, %v398
    %v400 = vrot.slane %v106, %v399
    %v401 = vadd.f32 %v342, %v400
    %v402 = vadd.f32 %v346, %v400
    %v403 = vpack.c.bf16 %v401, %v401
    %v404 = vpack.c.bf16 %v402, %v402
    %v405 = vlaneseq
    %v406 = vshrl.u32 %v405, 7
    %v407 = vsub.s32 6, %v406
    %v408 = vrot.slane %v106, %v407
    %v409 = vadd.f32 %v383, %v408
    %v410 = vadd.f32 %v386, %v408
    %v411 = vpack.c.bf16 %v409, %v409
    %v412 = vpack.c.bf16 %v410, %v410
    %413 = vmatprep.subr.bf16.mxu0 0
    %414 = vmatpush1.bf16.xpose.msra.mxu0 %v403
    %415 = vmatprep.subr.bf16.mxu0 0
    %416 = vmatpush1.bf16.xpose.msra.mxu0 0
    %417 = vmatprep.subr.bf16.mxu0 0
    %418 = vmatpush1.bf16.xpose.msra.mxu0 0
    %419 = vmatprep.subr.bf16.mxu0 0
    %420 = vmatpush1.bf16.xpose.msra.mxu0 0
    %421 = vmatprep.subr.bf16.mxu0 0
    %422 = vmatpush1.bf16.xpose.msra.mxu0 0
    %423 = vmatprep.subr.bf16.mxu0 0
    %424 = vmatpush1.bf16.xpose.msra.mxu0 0
    %425 = vmatprep.subr.bf16.mxu0 0
    %426 = vmatpush1.bf16.xpose.msra.mxu0 0
    %427 = vmatprep.subr.bf16.mxu0 0
    %428 = vmatpush1.bf16.xpose.msra.mxu0 0
    %429 = vmatprep.subr.bf16.mxu0 0
    %430 = vmatpush1.bf16.xpose.msra.mxu0 0
    %431 = vmatprep.subr.bf16.mxu0 0
    %432 = vmatpush1.bf16.xpose.msra.mxu0 0
    %433 = vmatprep.subr.bf16.mxu0 0
    %434 = vmatpush1.bf16.xpose.msra.mxu0 0
    %435 = vmatprep.subr.bf16.mxu0 0
    %436 = vmatpush1.bf16.xpose.msra.mxu0 0
    %437 = vmatprep.subr.bf16.mxu0 0
    %438 = vmatpush1.bf16.xpose.msra.mxu0 0
    %439 = vmatprep.subr.bf16.mxu0 0
    %440 = vmatpush1.bf16.xpose.msra.mxu0 0
    %441 = vmatprep.subr.bf16.mxu0 0
    %442 = vmatpush1.bf16.xpose.msra.mxu0 0
    %443 = vmatprep.subr.bf16.mxu0 0
    %444 = vmatpush1.bf16.xpose.msra.mxu0 0
    %445 = vmatprep.mubr.bf16.mxu0 0
    %446 = vmatmul.mubr.bf16.gmra.mrb[0].mxu0 %v395
    %v447 = vpop.f32.mrb[0].mxu0
    %v448 = vadd.f32 0.0, %v447
    %v449 = vpop.f32.mrb[0].mxu0
    %v450 = vpop.f32.mrb[0].mxu0
    %v451 = vpop.f32.mrb[0].mxu0
    %452 = vdwg.mxu0
    %453 = vmatprep.subr.bf16.mxu0 0
    %454 = vmatpush1.bf16.xpose.msra.mxu0 %v404
    %455 = vmatprep.subr.bf16.mxu0 0
    %456 = vmatpush1.bf16.xpose.msra.mxu0 0
    %457 = vmatprep.subr.bf16.mxu0 0
    %458 = vmatpush1.bf16.xpose.msra.mxu0 0
    %459 = vmatprep.subr.bf16.mxu0 0
    %460 = vmatpush1.bf16.xpose.msra.mxu0 0
    %461 = vmatprep.subr.bf16.mxu0 0
    %462 = vmatpush1.bf16.xpose.msra.mxu0 0
    %463 = vmatprep.subr.bf16.mxu0 0
    %464 = vmatpush1.bf16.xpose.msra.mxu0 0
    %465 = vmatprep.subr.bf16.mxu0 0
    %466 = vmatpush1.bf16.xpose.msra.mxu0 0
    %467 = vmatprep.subr.bf16.mxu0 0
    %468 = vmatpush1.bf16.xpose.msra.mxu0 0
    %469 = vmatprep.subr.bf16.mxu0 0
    %470 = vmatpush1.bf16.xpose.msra.mxu0 0
    %471 = vmatprep.subr.bf16.mxu0 0
    %472 = vmatpush1.bf16.xpose.msra.mxu0 0
    %473 = vmatprep.subr.bf16.mxu0 0
    %474 = vmatpush1.bf16.xpose.msra.mxu0 0
    %475 = vmatprep.subr.bf16.mxu0 0
    %476 = vmatpush1.bf16.xpose.msra.mxu0 0
    %477 = vmatprep.subr.bf16.mxu0 0
    %478 = vmatpush1.bf16.xpose.msra.mxu0 0
    %479 = vmatprep.subr.bf16.mxu0 0
    %480 = vmatpush1.bf16.xpose.msra.mxu0 0
    %481 = vmatprep.subr.bf16.mxu0 0
    %482 = vmatpush1.bf16.xpose.msra.mxu0 0
    %483 = vmatprep.subr.bf16.mxu0 0
    %484 = vmatpush1.bf16.xpose.msra.mxu0 0
    %485 = vmatprep.mubr.bf16.mxu0 0
    %486 = vmatmul.mubr.bf16.gmra.mrb[0].mxu0 %v396
    %v487 = vpop.f32.mrb[0].mxu0
    %v488 = vadd.f32 0.0, %v487
    %v489 = vpop.f32.mrb[0].mxu0
    %v490 = vpop.f32.mrb[0].mxu0
    %v491 = vpop.f32.mrb[0].mxu0
    %492 = vdwg.mxu0
    %v493 = vmul.f32 %v448, 0.088388346
    %v494 = vmul.f32 %v488, 0.088388346
    %vm495 = vcmp.eq.f32.partialorder %v104, 0.0
    %vm496 = vcmp.eq.f32.partialorder %v105, 0.0
    %v497 = vsel %vm495, 1, 0
    %v498 = vsel %vm496, 1, 0
    %v499 = vlaneseq
    %v500 = vshrl.u32 %v499, 7
    %v501 = vsub.s32 0, %v500
    %v502 = vrot.slane %v497, %v501
    %v503 = vlaneseq
    %v504 = vshrl.u32 %v503, 7
    %v505 = vsub.s32 0, %v504
    %v506 = vrot.slane %v498, %v505
    %vm507 = vcmp.eq.s32.totalorder %v502, 1
    %vm508 = vcmp.eq.s32.totalorder %v506, 1
    %v509 = vsel %vm507, -1e+09, %v493
    %v510 = vsel %vm508, -1e+09, %v494
    %vm511 = vcmask 64512
    %v512 = vsel %vm511, %v509, -inf
    %513 = vmax.xlane.f32.xlu0 %v512
    %v514 = vpop.xlane.xlu0 %513
    %v515 = vsel %vm511, %v510, -inf
    %516 = vmax.xlane.f32.xlu0 %v515
    %v517 = vpop.xlane.xlu0 %516
    %v518 = vsub.f32 %v509, %v514
    %v519 = vsub.f32 %v510, %v517
    %v520 = vmul.f32 %v518, 1.442695
    %v521 = vpow.pop %v520
    %v522 = vmul.f32 %v519, 1.442695
    %v523 = vpow.pop %v522
    %v524 = vsel %vm511, %v521, 0.0
    %525 = vadd.xlane.f32.xlu0 %v524
    %v526 = vpop.xlane.xlu0 %525
    %v527 = vsel %vm511, %v523, 0.0
    %528 = vadd.xlane.f32.xlu0 %v527
    %v529 = vpop.xlane.xlu0 %528
    %v530 = vrcp.pop %v526
    %v531 = vrcp.pop %v529
    %v532 = vmul.f32 %v521, %v530
    %v533 = vmul.f32 %v523, %v531
    %534 = vst.msk [vmem:[#allocation12] sm:$0xff] %vm511, %v532
    %535 = vst.msk [vmem:[#allocation12 + $0x8] sm:$0xff] %vm511, %v533
    %v536 = vpack.c.bf16 %v532, %v532
    %v537 = vpack.c.bf16 %v533, %v533
    %v539 = vsel %vm511, %v536, 0
    %vm541 = vcmask 1043456
    %v543 = vsel %vm541, %v411, 0
    %545 = vmatprep.subr.bf16.mxu0 0
    %546 = vmatpush1.bf16.msra.mxu0 %v543
    %547 = vmatprep.subr.bf16.mxu0 0
    %548 = vmatpush1.bf16.msra.mxu0 0
    %549 = vmatprep.subr.bf16.mxu0 0
    %550 = vmatpush1.bf16.msra.mxu0 0
    %551 = vmatprep.subr.bf16.mxu0 0
    %552 = vmatpush1.bf16.msra.mxu0 0
    %553 = vmatprep.subr.bf16.mxu0 0
    %554 = vmatpush1.bf16.msra.mxu0 0
    %555 = vmatprep.subr.bf16.mxu0 0
    %556 = vmatpush1.bf16.msra.mxu0 0
    %557 = vmatprep.subr.bf16.mxu0 0
    %558 = vmatpush1.bf16.msra.mxu0 0
    %559 = vmatprep.subr.bf16.mxu0 0
    %560 = vmatpush1.bf16.msra.mxu0 0
    %561 = vmatprep.subr.bf16.mxu0 0
    %562 = vmatpush1.bf16.msra.mxu0 0
    %563 = vmatprep.subr.bf16.mxu0 0
    %564 = vmatpush1.bf16.msra.mxu0 0
    %565 = vmatprep.subr.bf16.mxu0 0
    %566 = vmatpush1.bf16.msra.mxu0 0
    %567 = vmatprep.subr.bf16.mxu0 0
    %568 = vmatpush1.bf16.msra.mxu0 0
    %569 = vmatprep.subr.bf16.mxu0 0
    %570 = vmatpush1.bf16.msra.mxu0 0
    %571 = vmatprep.subr.bf16.mxu0 0
    %572 = vmatpush1.bf16.msra.mxu0 0
    %573 = vmatprep.subr.bf16.mxu0 0
    %574 = vmatpush1.bf16.msra.mxu0 0
    %575 = vmatprep.subr.bf16.mxu0 0
    %576 = vmatpush1.bf16.msra.mxu0 0
    %577 = vmatprep.mubr.bf16.mxu0 0
    %578 = vmatmul.mubr.bf16.gmra.mrb[0].mxu0 %v539
    %v579 = vpop.f32.mrb[0].mxu0
    %v580 = vadd.f32 0.0, %v579
    %v581 = vpop.f32.mrb[0].mxu0
    %v582 = vpop.f32.mrb[0].mxu0
    %v583 = vpop.f32.mrb[0].mxu0
    %584 = vdwg.mxu0
    %v586 = vsel %vm511, %v537, 0
    %v589 = vsel %vm541, %v412, 0
    %591 = vmatprep.subr.bf16.mxu0 0
    %592 = vmatpush1.bf16.msra.mxu0 %v589
    %593 = vmatprep.subr.bf16.mxu0 0
    %594 = vmatpush1.bf16.msra.mxu0 0
    %595 = vmatprep.subr.bf16.mxu0 0
    %596 = vmatpush1.bf16.msra.mxu0 0
    %597 = vmatprep.subr.bf16.mxu0 0
    %598 = vmatpush1.bf16.msra.mxu0 0
    %599 = vmatprep.subr.bf16.mxu0 0
    %600 = vmatpush1.bf16.msra.mxu0 0
    %601 = vmatprep.subr.bf16.mxu0 0
    %602 = vmatpush1.bf16.msra.mxu0 0
    %603 = vmatprep.subr.bf16.mxu0 0
    %604 = vmatpush1.bf16.msra.mxu0 0
    %605 = vmatprep.subr.bf16.mxu0 0
    %606 = vmatpush1.bf16.msra.mxu0 0
    %607 = vmatprep.subr.bf16.mxu0 0
    %608 = vmatpush1.bf16.msra.mxu0 0
    %609 = vmatprep.subr.bf16.mxu0 0
    %610 = vmatpush1.bf16.msra.mxu0 0
    %611 = vmatprep.subr.bf16.mxu0 0
    %612 = vmatpush1.bf16.msra.mxu0 0
    %613 = vmatprep.subr.bf16.mxu0 0
    %614 = vmatpush1.bf16.msra.mxu0 0
    %615 = vmatprep.subr.bf16.mxu0 0
    %616 = vmatpush1.bf16.msra.mxu0 0
    %617 = vmatprep.subr.bf16.mxu0 0
    %618 = vmatpush1.bf16.msra.mxu0 0
    %619 = vmatprep.subr.bf16.mxu0 0
    %620 = vmatpush1.bf16.msra.mxu0 0
    %621 = vmatprep.subr.bf16.mxu0 0
    %622 = vmatpush1.bf16.msra.mxu0 0
    %623 = vmatprep.mubr.bf16.mxu0 0
    %624 = vmatmul.mubr.bf16.gmra.mrb[0].mxu0 %v586
    %v625 = vpop.f32.mrb[0].mxu0
    %v626 = vadd.f32 0.0, %v625
    %v627 = vpop.f32.mrb[0].mxu0
    %v628 = vpop.f32.mrb[0].mxu0
    %v629 = vpop.f32.mrb[0].mxu0
    %630 = vdwg.mxu0
    %v631 = vpack.c.bf16 %v626, %v580
    %v632 = vld [vmem:[#allocation7] sm:$0xf]
    %v633 = vld [vmem:[#allocation7 + $0x4] sm:$0xf]
    %v634 = vld [vmem:[#allocation7 + $0x8] sm:$0xf]
    %v635 = vld [vmem:[#allocation7 + $0xc] sm:$0xf]
    %v636 = vld [vmem:[#allocation7 + $0x10] sm:$0xf]
    %v637 = vld [vmem:[#allocation7 + $0x14] sm:$0xf]
    %v638 = vld [vmem:[#allocation7 + $0x18] sm:$0xf]
    %v639 = vld [vmem:[#allocation7 + $0x1c] sm:$0xf]
    %v640 = vld [vmem:[#allocation7 + $0x20] sm:$0xf]
    %v641 = vld [vmem:[#allocation7 + $0x24] sm:$0xf]
    %v642 = vld [vmem:[#allocation7 + $0x28] sm:$0xf]
    %v643 = vld [vmem:[#allocation7 + $0x2c] sm:$0xf]
    %v644 = vld [vmem:[#allocation7 + $0x30] sm:$0xf]
    %v645 = vld [vmem:[#allocation7 + $0x34] sm:$0xf]
    %v646 = vld [vmem:[#allocation7 + $0x38] sm:$0xf]
    %v647 = vld [vmem:[#allocation7 + $0x3c] sm:$0xf]
    %v648 = vlaneseq
    %v649 = vshrl.u32 %v648, 7
    %v650 = vsub.s32 7, %v649
    %v651 = vrot.slane %v106, %v650
    %v668 = vunpack.c.l.b16 %v632
    %v669 = vunpack.c.l.b16 %v633
    %v670 = vunpack.c.l.b16 %v634
    %v671 = vunpack.c.l.b16 %v635
    %v672 = vunpack.c.l.b16 %v636
    %v673 = vunpack.c.l.b16 %v637
    %v674 = vunpack.c.l.b16 %v638
    %v675 = vunpack.c.l.b16 %v639
    %v676 = vunpack.c.l.b16 %v640
    %v677 = vunpack.c.l.b16 %v641
    %v678 = vunpack.c.l.b16 %v642
    %v679 = vunpack.c.l.b16 %v643
    %v680 = vunpack.c.l.b16 %v644
    %v681 = vunpack.c.l.b16 %v645
    %v682 = vunpack.c.l.b16 %v646
    %v683 = vunpack.c.l.b16 %v647
    %v684 = vpack.c.b16 %v669, %v668
    %v685 = vpack.c.b16 %v671, %v670
    %v686 = vpack.c.b16 %v673, %v672
    %v687 = vpack.c.b16 %v675, %v674
    %v688 = vpack.c.b16 %v677, %v676
    %v689 = vpack.c.b16 %v679, %v678
    %v690 = vpack.c.b16 %v681, %v680
    %v691 = vpack.c.b16 %v683, %v682
    %700 = vmatprep.subr.bf16.mxu0 0
    %701 = vmatpush1.bf16.msra.mxu0 %v684
    %702 = vmatprep.subr.bf16.mxu0 0
    %703 = vmatpush1.bf16.msra.mxu0 %v685
    %704 = vmatprep.subr.bf16.mxu0 0
    %705 = vmatpush1.bf16.msra.mxu0 %v686
    %706 = vmatprep.subr.bf16.mxu0 0
    %707 = vmatpush1.bf16.msra.mxu0 %v687
    %708 = vmatprep.subr.bf16.mxu0 0
    %709 = vmatpush1.bf16.msra.mxu0 %v688
    %710 = vmatprep.subr.bf16.mxu0 0
    %711 = vmatpush1.bf16.msra.mxu0 %v689
    %712 = vmatprep.subr.bf16.mxu0 0
    %713 = vmatpush1.bf16.msra.mxu0 %v690
    %714 = vmatprep.subr.bf16.mxu0 0
    %715 = vmatpush1.bf16.msra.mxu0 %v691
    %716 = vmatprep.subr.bf16.mxu0 0
    %717 = vmatpush1.bf16.msra.mxu0 0
    %718 = vmatprep.subr.bf16.mxu0 0
    %719 = vmatpush1.bf16.msra.mxu0 0
    %720 = vmatprep.subr.bf16.mxu0 0
    %721 = vmatpush1.bf16.msra.mxu0 0
    %722 = vmatprep.subr.bf16.mxu0 0
    %723 = vmatpush1.bf16.msra.mxu0 0
    %724 = vmatprep.subr.bf16.mxu0 0
    %725 = vmatpush1.bf16.msra.mxu0 0
    %726 = vmatprep.subr.bf16.mxu0 0
    %727 = vmatpush1.bf16.msra.mxu0 0
    %728 = vmatprep.subr.bf16.mxu0 0
    %729 = vmatpush1.bf16.msra.mxu0 0
    %730 = vmatprep.subr.bf16.mxu0 0
    %731 = vmatpush1.bf16.msra.mxu0 0
    %732 = vmatprep.mubr.bf16.mxu0 0
    %733 = vmatmul.mubr.bf16.gmra.mrb[0].mxu0 %v631
    %v734 = vpop.f32.mrb[0].mxu0
    %v735 = vadd.f32 %v651, %v734
    %v736 = vpop.f32.mrb[0].mxu0
    %v737 = vpop.f32.mrb[0].mxu0
    %v738 = vadd.f32 %v651, %v737
    %v739 = vpop.f32.mrb[0].mxu0
    %740 = vdwg.mxu0
    %v741 = vadd.f32 %v102, %v735
    %v742 = vadd.f32 %v103, %v738
    %743 = vadd.xlane.f32.xlu0 %v741
    %v744 = vpop.xlane.xlu0 %743
    %745 = vadd.xlane.f32.xlu0 %v742
    %v746 = vpop.xlane.xlu0 %745
    %v747 = vmul.f32 %v744, %v113
    %v748 = vmul.f32 %v746, %v113
    %v749 = vsub.f32 %v741, %v747
    %v750 = vsub.f32 %v742, %v748
    %v751 = vmul.f32 %v749, %v749
    %v752 = vmul.f32 %v750, %v750
    %753 = vadd.xlane.f32.xlu0 %v751
    %v754 = vpop.xlane.xlu0 %753
    %755 = vadd.xlane.f32.xlu0 %v752
    %v756 = vpop.xlane.xlu0 %755
    %v757 = vmul.f32 %v754, %v113
    %v758 = vmul.f32 %v756, %v113
    %v759 = vadd.f32 %v757, 1e-05
    %v760 = vadd.f32 %v758, 1e-05
    %v761 = vrsqrt.pop %v759
    %v762 = vrsqrt.pop %v760
    %v763 = vmul.f32 %v749, %v761
    %v764 = vmul.f32 %v750, %v762
    %v765 = vlaneseq
    %v766 = vshrl.u32 %v765, 7
    %v767 = vsub.s32 2, %v766
    %v768 = vrot.slane %v106, %v767
    %v769 = vmul.f32 %v763, %v768
    %v770 = vmul.f32 %v764, %v768
    %v771 = vlaneseq
    %v772 = vshrl.u32 %v771, 7
    %v773 = vsub.s32 3, %v772
    %v774 = vrot.slane %v106, %v773
    %v775 = vadd.f32 %v769, %v774
    %v776 = vadd.f32 %v770, %v774
    %v777 = vpack.c.bf16 %v776, %v775
    %v778 = vld [vmem:[#allocation8] sm:$0xff]
    %v779 = vld [vmem:[#allocation8 + $0x8] sm:$0xff]
    %v780 = vld [vmem:[#allocation8 + $0x10] sm:$0xff]
    %v781 = vld [vmem:[#allocation8 + $0x18] sm:$0xff]
    %v782 = vld [vmem:[#allocation8 + $0x20] sm:$0xff]
    %v783 = vld [vmem:[#allocation8 + $0x28] sm:$0xff]
    %v784 = vld [vmem:[#allocation8 + $0x30] sm:$0xff]
    %v785 = vld [vmem:[#allocation8 + $0x38] sm:$0xff]
    %v786 = vld [vmem:[#allocation8 + $0x40] sm:$0xff]
    %v787 = vld [vmem:[#allocation8 + $0x48] sm:$0xff]
    %v788 = vld [vmem:[#allocation8 + $0x50] sm:$0xff]
    %v789 = vld [vmem:[#allocation8 + $0x58] sm:$0xff]
    %v790 = vld [vmem:[#allocation8 + $0x60] sm:$0xff]
    %v791 = vld [vmem:[#allocation8 + $0x68] sm:$0xff]
    %v792 = vld [vmem:[#allocation8 + $0x70] sm:$0xff]
    %v793 = vld [vmem:[#allocation8 + $0x78] sm:$0xff]
    %v795 = vlaneseq
    %v796 = vshrl.u32 %v795, 7
    %v797 = vsub.s32 0, %v796
    %v798 = vrot.slane %v108, %v797
    %v799 = vlaneseq
    %v800 = vshrl.u32 %v799, 7
    %v801 = vsub.s32 1, %v800
    %v802 = vrot.slane %v108, %v801
    %v821 = vunpack.c.l.b16 %v778
    %v822 = vunpack.c.h.b16 %v778
    %v823 = vunpack.c.l.b16 %v779
    %v824 = vunpack.c.h.b16 %v779
    %v825 = vunpack.c.l.b16 %v780
    %v826 = vunpack.c.h.b16 %v780
    %v827 = vunpack.c.l.b16 %v781
    %v828 = vunpack.c.h.b16 %v781
    %v829 = vunpack.c.l.b16 %v782
    %v830 = vunpack.c.h.b16 %v782
    %v831 = vunpack.c.l.b16 %v783
    %v832 = vunpack.c.h.b16 %v783
    %v833 = vunpack.c.l.b16 %v784
    %v834 = vunpack.c.h.b16 %v784
    %v835 = vunpack.c.l.b16 %v785
    %v836 = vunpack.c.h.b16 %v785
    %v837 = vunpack.c.l.b16 %v786
    %v838 = vunpack.c.h.b16 %v786
    %v839 = vunpack.c.l.b16 %v787
    %v840 = vunpack.c.h.b16 %v787
    %v841 = vunpack.c.l.b16 %v788
    %v842 = vunpack.c.h.b16 %v788
    %v843 = vunpack.c.l.b16 %v789
    %v844 = vunpack.c.h.b16 %v789
    %v845 = vunpack.c.l.b16 %v790
    %v846 = vunpack.c.h.b16 %v790
    %v847 = vunpack.c.l.b16 %v791
    %v848 = vunpack.c.h.b16 %v791
    %v849 = vunpack.c.l.b16 %v792
    %v850 = vunpack.c.h.b16 %v792
    %v851 = vunpack.c.l.b16 %v793
    %v852 = vunpack.c.h.b16 %v793
    %v853 = vpack.c.b16 %v823, %v821
    %v854 = vpack.c.b16 %v824, %v822
    %v855 = vpack.c.b16 %v827, %v825
    %v856 = vpack.c.b16 %v828, %v826
    %v857 = vpack.c.b16 %v831, %v829
    %v858 = vpack.c.b16 %v832, %v830
    %v859 = vpack.c.b16 %v835, %v833
    %v860 = vpack.c.b16 %v836, %v834
    %v861 = vpack.c.b16 %v839, %v837
    %v862 = vpack.c.b16 %v840, %v838
    %v863 = vpack.c.b16 %v843, %v841
    %v864 = vpack.c.b16 %v844, %v842
    %v865 = vpack.c.b16 %v847, %v845
    %v866 = vpack.c.b16 %v848, %v846
    %v867 = vpack.c.b16 %v851, %v849
    %v868 = vpack.c.b16 %v852, %v850
    %885 = vmatprep.subr.bf16.mxu0 %v854
    %886 = vmatpush1.bf16.msra.mxu0 %v853
    %887 = vmatprep.subr.bf16.mxu0 %v856
    %888 = vmatpush1.bf16.msra.mxu0 %v855
    %889 = vmatprep.subr.bf16.mxu0 %v858
    %890 = vmatpush1.bf16.msra.mxu0 %v857
    %891 = vmatprep.subr.bf16.mxu0 %v860
    %892 = vmatpush1.bf16.msra.mxu0 %v859
    %893 = vmatprep.subr.bf16.mxu0 %v862
    %894 = vmatpush1.bf16.msra.mxu0 %v861
    %895 = vmatprep.subr.bf16.mxu0 %v864
    %896 = vmatpush1.bf16.msra.mxu0 %v863
    %897 = vmatprep.subr.bf16.mxu0 %v866
    %898 = vmatpush1.bf16.msra.mxu0 %v865
    %899 = vmatprep.subr.bf16.mxu0 %v868
    %900 = vmatpush1.bf16.msra.mxu0 %v867
    %901 = vmatprep.subr.bf16.mxu0 0
    %902 = vmatpush1.bf16.msra.mxu0 0
    %903 = vmatprep.subr.bf16.mxu0 0
    %904 = vmatpush1.bf16.msra.mxu0 0
    %905 = vmatprep.subr.bf16.mxu0 0
    %906 = vmatpush1.bf16.msra.mxu0 0
    %907 = vmatprep.subr.bf16.mxu0 0
    %908 = vmatpush1.bf16.msra.mxu0 0
    %909 = vmatprep.subr.bf16.mxu0 0
    %910 = vmatpush1.bf16.msra.mxu0 0
    %911 = vmatprep.subr.bf16.mxu0 0
    %912 = vmatpush1.bf16.msra.mxu0 0
    %913 = vmatprep.subr.bf16.mxu0 0
    %914 = vmatpush1.bf16.msra.mxu0 0
    %915 = vmatprep.subr.bf16.mxu0 0
    %916 = vmatpush1.bf16.msra.mxu0 0
    %917 = vmatprep.mubr.bf16.mxu0 0
    %918 = vmatmul.mubr.bf16.gmra.mrb[0].mxu0 %v777
    %v919 = vpop.f32.mrb[0].mxu0
    %v920 = vadd.f32 %v798, %v919
    %v921 = vpop.f32.mrb[0].mxu0
    %v922 = vadd.f32 %v802, %v921
    %v923 = vpop.f32.mrb[0].mxu0
    %v924 = vadd.f32 %v798, %v923
    %v925 = vpop.f32.mrb[0].mxu0
    %v926 = vadd.f32 %v802, %v925
    %927 = vdwg.mxu0
    %v928 = vpack.c.bf16 %v924, %v920
    %v929 = vpack.c.bf16 %v926, %v922
    %v930 = vld [vmem:[#allocation10] sm:$0xf]
    %v931 = vld [vmem:[#allocation10 + $0x4] sm:$0xf]
    %v932 = vld [vmem:[#allocation10 + $0x8] sm:$0xf]
    %v933 = vld [vmem:[#allocation10 + $0xc] sm:$0xf]
    %v934 = vld [vmem:[#allocation10 + $0x10] sm:$0xf]
    %v935 = vld [vmem:[#allocation10 + $0x14] sm:$0xf]
    %v936 = vld [vmem:[#allocation10 + $0x18] sm:$0xf]
    %v937 = vld [vmem:[#allocation10 + $0x1c] sm:$0xf]
    %v938 = vld [vmem:[#allocation10 + $0x20] sm:$0xf]
    %v939 = vld [vmem:[#allocation10 + $0x24] sm:$0xf]
    %v940 = vld [vmem:[#allocation10 + $0x28] sm:$0xf]
    %v941 = vld [vmem:[#allocation10 + $0x2c] sm:$0xf]
    %v942 = vld [vmem:[#allocation10 + $0x30] sm:$0xf]
    %v943 = vld [vmem:[#allocation10 + $0x34] sm:$0xf]
    %v944 = vld [vmem:[#allocation10 + $0x38] sm:$0xf]
    %v945 = vld [vmem:[#allocation10 + $0x3c] sm:$0xf]
    %v946 = vld [vmem:[#allocation10 + $0x40] sm:$0xf]
    %v947 = vld [vmem:[#allocation10 + $0x44] sm:$0xf]
    %v948 = vld [vmem:[#allocation10 + $0x48] sm:$0xf]
    %v949 = vld [vmem:[#allocation10 + $0x4c] sm:$0xf]
    %v950 = vld [vmem:[#allocation10 + $0x50] sm:$0xf]
    %v951 = vld [vmem:[#allocation10 + $0x54] sm:$0xf]
    %v952 = vld [vmem:[#allocation10 + $0x58] sm:$0xf]
    %v953 = vld [vmem:[#allocation10 + $0x5c] sm:$0xf]
    %v954 = vld [vmem:[#allocation10 + $0x60] sm:$0xf]
    %v955 = vld [vmem:[#allocation10 + $0x64] sm:$0xf]
    %v956 = vld [vmem:[#allocation10 + $0x68] sm:$0xf]
    %v957 = vld [vmem:[#allocation10 + $0x6c] sm:$0xf]
    %v958 = vld [vmem:[#allocation10 + $0x70] sm:$0xf]
    %v959 = vld [vmem:[#allocation10 + $0x74] sm:$0xf]
    %v960 = vld [vmem:[#allocation10 + $0x78] sm:$0xf]
    %v961 = vld [vmem:[#allocation10 + $0x7c] sm:$0xf]
    %v962 = vlaneseq
    %v963 = vshrl.u32 %v962, 7
    %v964 = vsub.s32 0, %v963
    %v965 = vrot.slane %v107, %v964
    %v998 = vunpack.c.l.b16 %v930
    %v999 = vunpack.c.l.b16 %v931
    %v1000 = vunpack.c.l.b16 %v932
    %v1001 = vunpack.c.l.b16 %v933
    %v1002 = vunpack.c.l.b16 %v934
    %v1003 = vunpack.c.l.b16 %v935
    %v1004 = vunpack.c.l.b16 %v936
    %v1005 = vunpack.c.l.b16 %v937
    %v1006 = vunpack.c.l.b16 %v938
    %v1007 = vunpack.c.l.b16 %v939
    %v1008 = vunpack.c.l.b16 %v940
    %v1009 = vunpack.c.l.b16 %v941
    %v1010 = vunpack.c.l.b16 %v942
    %v1011 = vunpack.c.l.b16 %v943
    %v1012 = vunpack.c.l.b16 %v944
    %v1013 = vunpack.c.l.b16 %v945
    %v1014 = vunpack.c.l.b16 %v946
    %v1015 = vunpack.c.l.b16 %v947
    %v1016 = vunpack.c.l.b16 %v948
    %v1017 = vunpack.c.l.b16 %v949
    %v1018 = vunpack.c.l.b16 %v950
    %v1019 = vunpack.c.l.b16 %v951
    %v1020 = vunpack.c.l.b16 %v952
    %v1021 = vunpack.c.l.b16 %v953
    %v1022 = vunpack.c.l.b16 %v954
    %v1023 = vunpack.c.l.b16 %v955
    %v1024 = vunpack.c.l.b16 %v956
    %v1025 = vunpack.c.l.b16 %v957
    %v1026 = vunpack.c.l.b16 %v958
    %v1027 = vunpack.c.l.b16 %v959
    %v1028 = vunpack.c.l.b16 %v960
    %v1029 = vunpack.c.l.b16 %v961
    %v1030 = vpack.c.b16 %v999, %v998
    %v1031 = vpack.c.b16 %v1001, %v1000
    %v1032 = vpack.c.b16 %v1003, %v1002
    %v1033 = vpack.c.b16 %v1005, %v1004
    %v1034 = vpack.c.b16 %v1007, %v1006
    %v1035 = vpack.c.b16 %v1009, %v1008
    %v1036 = vpack.c.b16 %v1011, %v1010
    %v1037 = vpack.c.b16 %v1013, %v1012
    %v1038 = vpack.c.b16 %v1015, %v1014
    %v1039 = vpack.c.b16 %v1017, %v1016
    %v1040 = vpack.c.b16 %v1019, %v1018
    %v1041 = vpack.c.b16 %v1021, %v1020
    %v1042 = vpack.c.b16 %v1023, %v1022
    %v1043 = vpack.c.b16 %v1025, %v1024
    %v1044 = vpack.c.b16 %v1027, %v1026
    %v1045 = vpack.c.b16 %v1029, %v1028
    %1062 = vmatprep.subr.bf16.mxu0 0
    %1063 = vmatpush1.bf16.msra.mxu0 %v1030
    %1064 = vmatprep.subr.bf16.mxu0 0
    %1065 = vmatpush1.bf16.msra.mxu0 %v1031
    %1066 = vmatprep.subr.bf16.mxu0 0
    %1067 = vmatpush1.bf16.msra.mxu0 %v1032
    %1068 = vmatprep.subr.bf16.mxu0 0
    %1069 = vmatpush1.bf16.msra.mxu0 %v1033
    %1070 = vmatprep.subr.bf16.mxu0 0
    %1071 = vmatpush1.bf16.msra.mxu0 %v1034
    %1072 = vmatprep.subr.bf16.mxu0 0
    %1073 = vmatpush1.bf16.msra.mxu0 %v1035
    %1074 = vmatprep.subr.bf16.mxu0 0
    %1075 = vmatpush1.bf16.msra.mxu0 %v1036
    %1076 = vmatprep.subr.bf16.mxu0 0
    %1077 = vmatpush1.bf16.msra.mxu0 %v1037
    %1078 = vmatprep.subr.bf16.mxu0 0
    %1079 = vmatpush1.bf16.msra.mxu0 %v1038
    %1080 = vmatprep.subr.bf16.mxu0 0
    %1081 = vmatpush1.bf16.msra.mxu0 %v1039
    %1082 = vmatprep.subr.bf16.mxu0 0
    %1083 = vmatpush1.bf16.msra.mxu0 %v1040
    %1084 = vmatprep.subr.bf16.mxu0 0
    %1085 = vmatpush1.bf16.msra.mxu0 %v1041
    %1086 = vmatprep.subr.bf16.mxu0 0
    %1087 = vmatpush1.bf16.msra.mxu0 %v1042
    %1088 = vmatprep.subr.bf16.mxu0 0
    %1089 = vmatpush1.bf16.msra.mxu0 %v1043
    %1090 = vmatprep.subr.bf16.mxu0 0
    %1091 = vmatpush1.bf16.msra.mxu0 %v1044
    %1092 = vmatprep.subr.bf16.mxu0 0
    %1093 = vmatpush1.bf16.msra.mxu0 %v1045
    %1094 = vmatprep.mubr.bf16.mxu0 %v929
    %1095 = vmatmul.mubr.bf16.gmra.mrb[0].mxu0 %v928
    %v1096 = vpop.f32.mrb[0].mxu0
    %v1097 = vadd.f32 %v965, %v1096
    %v1098 = vpop.f32.mrb[0].mxu0
    %v1099 = vpop.f32.mrb[0].mxu0
    %v1100 = vadd.f32 %v965, %v1099
    %v1101 = vpop.f32.mrb[0].mxu0
    %1102 = vdwg.mxu0
    %v1103 = vadd.f32 %v741, %v1097
    %v1104 = vadd.f32 %v742, %v1100
    %1105 = vst [vmem:[#allocation11] sm:$0xff] %v1103
    %1106 = vst [vmem:[#allocation11 + $0x8] sm:$0xff] %v1104
    // Predicated region
    $region54: #{tpu_custom_call.1} parent=1 // pred_check
      _
    $region55: #{tpu_custom_call.1} parent=1 // pred_check_branch
      %1108 = sbr.rel (0) target = $region57
    $region56: #{tpu_custom_call.1} parent=1 // pred_region
      %s1110 = ssub.s32 256, 256
      %1111 = vsyncadd [#allocation4], %s1110
      %s1112 = sshll.u32 [#allocation11], 4
      %s1113 = int_to_ptr.vmem [resolvable:$true] %s1112
      %1118 = dma.vmem_to_hbm [thread:$0]  %s1113, 256, %s8, [#allocation4], 128, 128, 8
    $region57: #{tpu_custom_call.1} parent=1 // pred_fallthru
      _
    // Predicated region
    $region58: #{tpu_custom_call.1} parent=1 // pred_check
      _
    $region59: #{tpu_custom_call.1} parent=1 // pred_check_branch
      %1120 = sbr.rel (0) target = $region61
    $region60: #{tpu_custom_call.1} parent=1 // pred_region
      %s1122 = ssub.s32 256, 256
      %1123 = vsyncadd [#allocation13], %s1122
      %s1124 = sshll.u32 [#allocation12], 4
      %s1125 = int_to_ptr.vmem [resolvable:$true] %s1124
      %1130 = dma.vmem_to_hbm [thread:$0]  %s1125, 256, %s9, [#allocation13], 128, 128, 8
    $region61: #{tpu_custom_call.1} parent=1 // pred_fallthru
      _
    // Predicated region
    $region62: #{tpu_custom_call.1} parent=1 // pred_check
      _
    $region63: #{tpu_custom_call.1} parent=1 // pred_check_branch
      %1132 = sbr.rel (0) target = $region65
    $region64: #{tpu_custom_call.1} parent=1 // pred_region
      %1133 = dma.done [#allocation4], 256
    $region65: #{tpu_custom_call.1} parent=1 // pred_fallthru
      _
    // Predicated region
    $region66: #{tpu_custom_call.1} parent=1 // pred_check
      _
    $region67: #{tpu_custom_call.1} parent=1 // pred_check_branch
      %1135 = sbr.rel (0) target = $region69
    $region68: #{tpu_custom_call.1} parent=1 // pred_region
      %1136 = dma.done [#allocation13], 256
    $region69: #{tpu_custom_call.1} parent=1 // pred_fallthru
      _
    %1137 = vsyncpa [#allocation3], 1
    %1138 = vsyncpa [#allocation6], 1
    %1139 = vsyncpa [#allocation9], 1
    %1140 = vsyncpa [#allocation4], 1
    %1141 = vsyncpa [#allocation13], 1

</llo_original>
